<compile_context>
chip_gen: v5e
topology: v5e:2x2
jax: 0.10.0
libtpu: 0.0.40
codegen_flags: <defaults>
</compile_context>

<pallas_src>
import jax
import jax.numpy as jnp
from jax.experimental import pallas as pl
from jax.experimental.pallas import tpu as pltpu


# ---------------------------------------------------------------------------
# Kernels
# ---------------------------------------------------------------------------
def _ffg_train_kernel(x_ref, w_ref, b_ref, eps_ref, z_ref, mu_ref, lv_ref):
    K = mu_ref.shape[-1]
    L = eps_ref.shape[-1] // K

    # Single fused matmul for both linears: [tB, D] @ [D, 2K] -> [tB, 2K]
    h = jnp.dot(x_ref[...], w_ref[...],
                preferred_element_type=jnp.float32) + b_ref[...]
    mu = h[:, :K]                       # [tB, K]
    lv = h[:, K:]                       # [tB, K]
    std = jnp.exp(0.5 * lv)             # EUP

    # Lane-tile mu/std over L so the z store is lane-dense [tB, L*K].
    if L > 1:
        mu_t = jnp.concatenate([mu] * L, axis=-1)    # [tB, L*K]
        std_t = jnp.concatenate([std] * L, axis=-1)  # [tB, L*K]
    else:
        mu_t, std_t = mu, std

    z_ref[...] = (mu_t + std_t * eps_ref[...]).astype(z_ref.dtype)
    mu_ref[...] = mu.astype(mu_ref.dtype)
    lv_ref[...] = lv.astype(lv_ref.dtype)


def _ffg_eval_kernel(x_ref, w_ref, b_ref, mu_ref, lv_ref):
    K = mu_ref.shape[-1]
    h = jnp.dot(x_ref[...], w_ref[...],
                preferred_element_type=jnp.float32) + b_ref[...]
    mu_ref[...] = h[:, :K].astype(mu_ref.dtype)
    lv_ref[...] = h[:, K:].astype(lv_ref.dtype)


# ---------------------------------------------------------------------------
# Wrapper
# ---------------------------------------------------------------------------
def _batch_tile(B, max_tile=512):
    """Largest multiple-of-8 divisor of B that is <= max_tile, else B."""
    if B <= max_tile:
        return B
    t = max_tile - (max_tile % 8)
    while t >= 8:
        if B % t == 0:
            return t
        t -= 8
    return B  # fall back to a single full-batch block


def fully_factorized_gaussian(x, w_mu, b_mu, w_lv, b_lv, eps=None, *,
                              L=None, training=True, compute_dtype=None):
    """Returns (z, mu, log_var) matching the PyTorch module's semantics.

    training=True : z = mu + exp(0.5*log_var)*eps, mu returned as [B, L, K]
    training=False: z = broadcast(mu) over L,      mu returned as [B, K]
    log_var is always f32. `compute_dtype=jnp.bfloat16` optionally casts
    x / fused W for bf16-native MXUs (v6e/v7x); accumulation stays f32.
    """
    B, D = x.shape
    K = w_mu.shape[1]
    if training:
        assert eps is not None, "training=True requires eps of shape [B, L, K]"
        L = eps.shape[1]
    else:
        assert L is not None and L >= 1

    # Fuse the two linears: one [D, 2K] weight, one [1, 2K] bias.
    W = jnp.concatenate([w_mu, w_lv], axis=1)
    b = jnp.concatenate([b_mu.reshape(1, K), b_lv.reshape(1, K)], axis=1)

    x_in = x
    if compute_dtype is not None:
        x_in = x.astype(compute_dtype)
        W = W.astype(compute_dtype)

    tB = _batch_tile(B)
    grid = (B // tB,)

    vmem = pltpu.MemorySpace.VMEM
    x_spec = pl.BlockSpec((tB, D), lambda i: (i, 0), memory_space=vmem)
    w_spec = pl.BlockSpec((D, 2 * K), lambda i: (0, 0), memory_space=vmem)
    b_spec = pl.BlockSpec((1, 2 * K), lambda i: (0, 0), memory_space=vmem)
    mu_spec = pl.BlockSpec((tB, K), lambda i: (i, 0), memory_space=vmem)
    lv_spec = pl.BlockSpec((tB, K), lambda i: (i, 0), memory_space=vmem)

    # Safe for v7x's 64 MiB physical / 32 MiB default-scoped VMEM; tiles above
    # are sized well under this.
    cparams = pltpu.CompilerParams(
        dimension_semantics=("parallel",),
        vmem_limit_bytes=32 * 1024 * 1024,
    )

    if training:
        eps_flat = eps.reshape(B, L * K)              # lane-dense layout
        zk_spec = pl.BlockSpec((tB, L * K), lambda i: (i, 0), memory_space=vmem)
        z_flat, mu, log_var = pl.pallas_call(
            _ffg_train_kernel,
            grid=grid,
            in_specs=[x_spec, w_spec, b_spec, zk_spec],
            out_specs=[zk_spec, mu_spec, lv_spec],
            out_shape=(
                jax.ShapeDtypeStruct((B, L * K), x.dtype),   # z (lane-dense)
                jax.ShapeDtypeStruct((B, K), x.dtype),       # mu (compact)
                jax.ShapeDtypeStruct((B, K), jnp.float32),   # log_var (f32)
            ),
            compiler_params=cparams,
        )(x_in, W, b, eps_flat)

        z = z_flat.reshape(B, L, K)
        mu_exp = jnp.broadcast_to(mu[:, None, :], (B, L, K))  # cheap XLA bcast
        return z, mu_exp, log_var

    # Eval path: no eps DMA, no exp/std, no z store inside the kernel.
    mu, log_var = pl.pallas_call(
        _ffg_eval_kernel,
        grid=grid,
        in_specs=[x_spec, w_spec, b_spec],
        out_specs=[mu_spec, lv_spec],
        out_shape=(
            jax.ShapeDtypeStruct((B, K), x.dtype),
            jax.ShapeDtypeStruct((B, K), jnp.float32),
        ),
        compiler_params=cparams,
    )(x_in, W, b)
    z = jnp.broadcast_to(mu[:, None, :], (B, L, K))
    return z, mu, log_var


# ---------------------------------------------------------------------------
# Self-test
# ---------------------------------------------------------------------------
if __name__ == "__main__":
    # Small deterministic setup consistent with the module:
    #   x: [B, D] flattened input, latent_dim K, L samples per input.
    B, D, K, L = 8, 32, 16, 4

    key = jax.random.PRNGKey(0)
    kx, kwm, kbm, kwl, kbl, keps = jax.random.split(key, 6)

    x = jax.random.normal(kx, (B, D), dtype=jnp.float32)

    # Deterministic "Linear" parameter init (uniform, Lecun-ish scale).
    bound = 1.0 / jnp.sqrt(jnp.float32(D))
    w_mu = jax.random.uniform(kwm, (D, K), jnp.float32, -bound, bound)
    b_mu = jax.random.uniform(kbm, (K,), jnp.float32, -bound, bound)
    w_lv = jax.random.uniform(kwl, (D, K), jnp.float32, -bound, bound)
    b_lv = jax.random.uniform(kbl, (K,), jnp.float32, -bound, bound)

    # eps ~ N(0,1) generated in plain JAX (glue) for determinism.
    # TODO(synk): torch.randn_like draws eps inside the module; here eps is an
    # explicit input so the kernel stays deterministic/testable.
    eps = jax.random.normal(keps, (B, L, K), dtype=jnp.float32)

    # ---- training path ----
    z, mu, log_var = fully_factorized_gaussian(
        x, w_mu, b_mu, w_lv, b_lv, eps, training=True)
    jax.block_until_ready((z, mu, log_var))

    # Pure-JAX reference.
    mu_ref = x @ w_mu + b_mu
    lv_ref = x @ w_lv + b_lv
    std_ref = jnp.exp(0.5 * lv_ref)
    z_ref = mu_ref[:, None, :] + std_ref[:, None, :] * eps
    mu_exp_ref = jnp.broadcast_to(mu_ref[:, None, :], (B, L, K))

    assert z.shape == (B, L, K) and mu.shape == (B, L, K) and log_var.shape == (B, K)
    assert jnp.allclose(z, z_ref, atol=1e-5, rtol=1e-5)
    assert jnp.allclose(mu, mu_exp_ref, atol=1e-5, rtol=1e-5)
    assert jnp.allclose(log_var, lv_ref, atol=1e-5, rtol=1e-5)

    # ---- eval path (skips eps / exp / z work entirely) ----
    z_e, mu_e, lv_e = fully_factorized_gaussian(
        x, w_mu, b_mu, w_lv, b_lv, L=L, training=False)
    jax.block_until_ready((z_e, mu_e, lv_e))

    assert z_e.shape == (B, L, K) and mu_e.shape == (B, K) and lv_e.shape == (B, K)
    assert jnp.allclose(z_e, mu_exp_ref, atol=1e-5, rtol=1e-5)
    assert jnp.allclose(mu_e, mu_ref, atol=1e-5, rtol=1e-5)
    assert jnp.allclose(lv_e, lv_ref, atol=1e-5, rtol=1e-5)

    print("KERNEL_OK")
</pallas_src>

<mosaic_0001>
module attributes {stable_mosaic.version = 11 : i64} {
  func.func @_ffg_train_kernel(%arg0: i32, %arg1: memref<8x32xf32, #tpu.memory_space<vmem>>, %arg2: memref<32x32xf32, #tpu.memory_space<vmem>>, %arg3: memref<1x32xf32, #tpu.memory_space<vmem>>, %arg4: memref<8x64xf32, #tpu.memory_space<vmem>>, %arg5: memref<8x64xf32, #tpu.memory_space<vmem>>, %arg6: memref<8x16xf32, #tpu.memory_space<vmem>>, %arg7: memref<8x16xf32, #tpu.memory_space<vmem>>) attributes {dimension_semantics = [#tpu.dimension_semantics<parallel>], iteration_bounds = array<i64: 1>, scalar_prefetch = 0 : i64, scratch_operands = 0 : i64, tpu.core_type = #tpu.core_type<tc>, window_params = [{transform_indices = @transform_0, window_bounds = array<i64: 8, 32>}, {pipeline_mode = #tpu.pipeline_mode<synchronous>, transform_indices = @transform_1, window_bounds = array<i64: 32, 32>}, {pipeline_mode = #tpu.pipeline_mode<synchronous>, transform_indices = @transform_2, window_bounds = array<i64: 1, 32>}, {transform_indices = @transform_3, window_bounds = array<i64: 8, 64>}, {transform_indices = @transform_4, window_bounds = array<i64: 8, 64>}, {transform_indices = @transform_5, window_bounds = array<i64: 8, 16>}, {transform_indices = @transform_6, window_bounds = array<i64: 8, 16>}]} {
    %c0 = arith.constant 0 : index
    %c0_0 = arith.constant 0 : index
    %0 = vector.load %arg1[%c0, %c0_0] : memref<8x32xf32, #tpu.memory_space<vmem>>, vector<8x32xf32>
    %c0_1 = arith.constant 0 : index
    %c0_2 = arith.constant 0 : index
    %1 = vector.load %arg2[%c0_1, %c0_2] : memref<32x32xf32, #tpu.memory_space<vmem>>, vector<32x32xf32>
    %cst = arith.constant dense<0.000000e+00> : vector<8x32xf32>
    %2 = tpu.matmul %0, %1, %cst {dimension_numbers = #tpu.dot_dimension_numbers<[1], [0], [0], [1], [0, 0, 1, 1], [], []>} : vector<8x32xf32>, vector<32x32xf32>, vector<8x32xf32> -> vector<8x32xf32>
    %c0_3 = arith.constant 0 : index
    %c0_4 = arith.constant 0 : index
    %3 = vector.load %arg3[%c0_3, %c0_4] : memref<1x32xf32, #tpu.memory_space<vmem>>, vector<1x32xf32>
    %4 = vector.broadcast %3 : vector<1x32xf32> to vector<8x32xf32>
    %5 = arith.addf %2, %4 : vector<8x32xf32>
    %6 = vector.extract_strided_slice %5 {offsets = [0, 0], sizes = [8, 16], strides = [1, 1]} : vector<8x32xf32> to vector<8x16xf32>
    %7 = vector.extract_strided_slice %5 {offsets = [0, 16], sizes = [8, 16], strides = [1, 1]} : vector<8x32xf32> to vector<8x16xf32>
    %cst_5 = arith.constant 5.000000e-01 : f32
    %8 = vector.broadcast %cst_5 : f32 to vector<8x16xf32>
    %9 = arith.mulf %8, %7 : vector<8x16xf32>
    %10 = math.exp %9 : vector<8x16xf32>
    %11 = tpu.concatenate %6, %6, %6, %6 in 1 : vector<8x16xf32>, vector<8x16xf32>, vector<8x16xf32>, vector<8x16xf32> -> vector<8x64xf32>
    %12 = tpu.concatenate %10, %10, %10, %10 in 1 : vector<8x16xf32>, vector<8x16xf32>, vector<8x16xf32>, vector<8x16xf32> -> vector<8x64xf32>
    %c0_6 = arith.constant 0 : index
    %c0_7 = arith.constant 0 : index
    %13 = vector.load %arg4[%c0_6, %c0_7] : memref<8x64xf32, #tpu.memory_space<vmem>>, vector<8x64xf32>
    %14 = arith.mulf %12, %13 : vector<8x64xf32>
    %15 = arith.addf %11, %14 : vector<8x64xf32>
    %c0_8 = arith.constant 0 : index
    %c0_9 = arith.constant 0 : index
    %16 = vector.load %arg5[%c0_8, %c0_9] : memref<8x64xf32, #tpu.memory_space<vmem>>, vector<8x64xf32>
    tpu.vector_store %arg5[%c0_8, %c0_9], %15 {strides = array<i32>} : memref<8x64xf32, #tpu.memory_space<vmem>>, vector<8x64xf32>,
    %c0_10 = arith.constant 0 : index
    %c0_11 = arith.constant 0 : index
    %17 = vector.load %arg6[%c0_10, %c0_11] : memref<8x16xf32, #tpu.memory_space<vmem>>, vector<8x16xf32>
    tpu.vector_store %arg6[%c0_10, %c0_11], %6 {strides = array<i32>} : memref<8x16xf32, #tpu.memory_space<vmem>>, vector<8x16xf32>,
    %c0_12 = arith.constant 0 : index
    %c0_13 = arith.constant 0 : index
    %18 = vector.load %arg7[%c0_12, %c0_13] : memref<8x16xf32, #tpu.memory_space<vmem>>, vector<8x16xf32>
    tpu.vector_store %arg7[%c0_12, %c0_13], %7 {strides = array<i32>} : memref<8x16xf32, #tpu.memory_space<vmem>>, vector<8x16xf32>,
    return
  }
  func.func @transform_0(%arg0: i32) -> (i32, i32) {
    %c0_i32 = arith.constant 0 : i32
    %c0_i32_0 = arith.constant 0 : i32
    return %arg0, %c0_i32 : i32, i32
  }
  func.func @transform_1(%arg0: i32) -> (i32, i32) {
    %c0_i32 = arith.constant 0 : i32
    %c0_i32_0 = arith.constant 0 : i32
    %c0_i32_1 = arith.constant 0 : i32
    return %c0_i32, %c0_i32_0 : i32, i32
  }
  func.func @transform_2(%arg0: i32) -> (i32, i32) {
    %c0_i32 = arith.constant 0 : i32
    %c0_i32_0 = arith.constant 0 : i32
    %c0_i32_1 = arith.constant 0 : i32
    return %c0_i32, %c0_i32_0 : i32, i32
  }
  func.func @transform_3(%arg0: i32) -> (i32, i32) {
    %c0_i32 = arith.constant 0 : i32
    %c0_i32_0 = arith.constant 0 : i32
    return %arg0, %c0_i32 : i32, i32
  }
  func.func @transform_4(%arg0: i32) -> (i32, i32) {
    %c0_i32 = arith.constant 0 : i32
    %c0_i32_0 = arith.constant 0 : i32
    return %arg0, %c0_i32 : i32, i32
  }
  func.func @transform_5(%arg0: i32) -> (i32, i32) {
    %c0_i32 = arith.constant 0 : i32
    %c0_i32_0 = arith.constant 0 : i32
    return %arg0, %c0_i32 : i32, i32
  }
  func.func @transform_6(%arg0: i32) -> (i32, i32) {
    %c0_i32 = arith.constant 0 : i32
    %c0_i32_0 = arith.constant 0 : i32
    return %arg0, %c0_i32 : i32, i32
  }
}

</mosaic_0001>

<llo_original>
// kernel: tpu_custom_call.1
$region0: #{tpu_custom_call.1}
  #allocation0 [shape = 'u32[]', space=smem, size = 0x4, offset = 0x4, fixed_abs, tag = 'smem constant byte address 0x4 - core index']
  #allocation1 [shape = 'u32[72,128]{1,0:T(1,128)}', space=vmem, size = 0x9000, scoped, tag = 'internal scratch']
  %s0 = inlined_call_operand.hbm [shape: f32[8,32], index: 0, kind: input, shape index: {}]
  %s1 = inlined_call_operand.hbm [shape: f32[32,32], index: 1, kind: input, shape index: {}]
  %s2 = inlined_call_operand.vmem [shape: f32[1,32], index: 2, kind: input, shape index: {}]
  %s3 = inlined_call_operand.hbm [shape: f32[8,64], index: 3, kind: input, shape index: {}]
  %s4 = inlined_call_operand.hbm [shape: f32[8,64], index: 4, kind: output, shape index: {0}]
  %s5 = inlined_call_operand.hbm [shape: f32[8,16], index: 5, kind: output, shape index: {1}]
  %s6 = inlined_call_operand.hbm [shape: f32[8,16], index: 6, kind: output, shape index: {2}]
  %7 = xla_tuple %s4, %s5, %s6
  %s8 = sld [smem:[#allocation0]]
  $region54: #{tpu_custom_call.1} parent=0
    _
  %s10 = ssub.s32 1, %s8
  %s11 = scalar_select 0, %s10, %s8
  $region1: #{tpu_custom_call.1} parent=0
    #allocation2 [shape = 'u8[4096]{0}', space=vmem, size = 0x1000, scoped, tag = 'input window, operand 0, single buffered']
    #allocation3 [shape = 's32[1]{0}', space=sflag, size = 0x4, scoped, tag = 'scoped memory for tpu_custom_call.1']
    #allocation4 [shape = 's32[1]{0}', space=sflag, size = 0x4, scoped, tag = 'scoped memory for tpu_custom_call.1']
    #allocation5 [shape = 'u8[16384]{0}', space=vmem, size = 0x4000, scoped, tag = 'input window, operand 1, single buffered']
    #allocation6 [shape = 's32[1]{0}', space=sflag, size = 0x4, scoped, tag = 'scoped memory for tpu_custom_call.1']
    #allocation7 [shape = 'u8[4096]{0}', space=vmem, size = 0x1000, scoped, tag = 'input window, operand 3, single buffered']
    #allocation8 [shape = 'u8[4096]{0}', space=vmem, size = 0x1000, scoped, tag = 'output window, operand 0, single buffered']
    #allocation9 [shape = 'u8[4096]{0}', space=vmem, size = 0x1000, scoped, tag = 'output window, operand 1, single buffered']
    #allocation10 [shape = 's32[1]{0}', space=sflag, size = 0x4, scoped, tag = 'scoped memory for tpu_custom_call.1']
    #allocation11 [shape = 'u8[4096]{0}', space=vmem, size = 0x1000, scoped, tag = 'output window, operand 2, single buffered']
    %12 = vsyncpa [#allocation3], 0
    %13 = vsyncpa [#allocation6], 0
    %14 = vsyncpa [#allocation4], 0
    %15 = vsyncpa [#allocation10], 0
    // Predicated region
    $region2: #{tpu_custom_call.1} parent=1 // pred_check
      _
    $region3: #{tpu_custom_call.1} parent=1 // pred_check_branch
      %17 = sbr.rel (0) target = $region5
    $region4: #{tpu_custom_call.1} parent=1 // pred_region
      %19 = vsyncadd [#allocation3], 0
      %s21 = sshll.u32 %s0, 4
      %s22 = int_to_ptr.hbm [resolvable:$true] %s21
      %s23 = sshll.u32 [#allocation2], 4
      %s24 = int_to_ptr.vmem [resolvable:$true] %s23
      %26 = dma.hbm_to_vmem [thread:$0]  %s22, 128, %s24, [#allocation3]
    $region5: #{tpu_custom_call.1} parent=1 // pred_fallthru
      _
    // Predicated region
    $region6: #{tpu_custom_call.1} parent=1 // pred_check
      _
    $region7: #{tpu_custom_call.1} parent=1 // pred_check_branch
      %28 = sbr.rel (0) target = $region9
    $region8: #{tpu_custom_call.1} parent=1 // pred_region
      %30 = vsyncadd [#allocation6], 0
      %s31 = sshll.u32 %s1, 4
      %s32 = int_to_ptr.hbm [resolvable:$true] %s31
      %s33 = sshll.u32 [#allocation5], 4
      %s34 = int_to_ptr.vmem [resolvable:$true] %s33
      %39 = dma.hbm_to_vmem [thread:$0]  %s32, 512, %s34, [#allocation6], 128, 128, 8
    $region9: #{tpu_custom_call.1} parent=1 // pred_fallthru
      _
    // Predicated region
    $region10: #{tpu_custom_call.1} parent=1 // pred_check
      _
    $region11: #{tpu_custom_call.1} parent=1 // pred_check_branch
      %41 = sbr.rel (0) target = $region13
    $region12: #{tpu_custom_call.1} parent=1 // pred_region
      _
    $region13: #{tpu_custom_call.1} parent=1 // pred_fallthru
      _
    // Predicated region
    $region14: #{tpu_custom_call.1} parent=1 // pred_check
      _
    $region15: #{tpu_custom_call.1} parent=1 // pred_check_branch
      %43 = sbr.rel (0) target = $region17
    $region16: #{tpu_custom_call.1} parent=1 // pred_region
      %45 = vsyncadd [#allocation6], 0
      %s47 = sshll.u32 %s3, 4
      %s48 = int_to_ptr.hbm [resolvable:$true] %s47
      %s49 = sshll.u32 [#allocation7], 4
      %s50 = int_to_ptr.vmem [resolvable:$true] %s49
      %52 = dma.hbm_to_vmem [thread:$0]  %s48, 128, %s50, [#allocation6]
    $region17: #{tpu_custom_call.1} parent=1 // pred_fallthru
      _
    // Predicated region
    $region18: #{tpu_custom_call.1} parent=1 // pred_check
      _
    $region19: #{tpu_custom_call.1} parent=1 // pred_check_branch
      %54 = sbr.rel (0) target = $region21
    $region20: #{tpu_custom_call.1} parent=1 // pred_region
      %56 = dma.done [#allocation3], 128
    $region21: #{tpu_custom_call.1} parent=1 // pred_fallthru
      _
    // Predicated region
    $region22: #{tpu_custom_call.1} parent=1 // pred_check
      _
    $region23: #{tpu_custom_call.1} parent=1 // pred_check_branch
      %58 = sbr.rel (0) target = $region25
    $region24: #{tpu_custom_call.1} parent=1 // pred_region
      %60 = dma.done [#allocation6], 512
    $region25: #{tpu_custom_call.1} parent=1 // pred_fallthru
      _
    // Predicated region
    $region26: #{tpu_custom_call.1} parent=1 // pred_check
      _
    $region27: #{tpu_custom_call.1} parent=1 // pred_check_branch
      %62 = sbr.rel (0) target = $region29
    $region28: #{tpu_custom_call.1} parent=1 // pred_region
      %64 = dma.done [#allocation6], 128
    $region29: #{tpu_custom_call.1} parent=1 // pred_fallthru
      _
    %v65 = vld [vmem:[#allocation2] sm:$0xff]
    %v66 = vld [vmem:[#allocation5] sm:$0xff]
    %v67 = vld [vmem:[#allocation5 + $0x8] sm:$0xff]
    %v68 = vld [vmem:[#allocation5 + $0x10] sm:$0xff]
    %v69 = vld [vmem:[#allocation5 + $0x18] sm:$0xff]
    %v70 = vld [vmem:[%s2] sm:$0x1]
    %v72 = vperm.slane %v70, 0
    %vm74 = vcmask 261120
    %v76 = vsel %vm74, %v65, 0
    %78 = vmatpush.msra.mxu0 0.0
    %79 = vmatpush.msra.mxu0 0.0
    %80 = vmatpush.msra.mxu0 0.0
    %81 = vmatpush.msra.mxu0 0.0
    %82 = vmatpush.msra.mxu0 0.0
    %83 = vmatpush.msra.mxu0 0.0
    %84 = vmatpush.msra.mxu0 0.0
    %85 = vmatpush.msra.mxu0 0.0
    %86 = vmatpush.msra.mxu0 0.0
    %87 = vmatpush.msra.mxu0 0.0
    %88 = vmatpush.msra.mxu0 0.0
    %89 = vmatpush.msra.mxu0 0.0
    %90 = vmatpush.msra.mxu0 %v69
    %91 = vmatpush.msra.mxu0 %v68
    %92 = vmatpush.msra.mxu0 %v67
    %93 = vmatpush.msra.mxu0 %v66
    %94 = vmatmul.f32.gmra.mxu0 %v76
    %v95 = vpop.f32.mrf.mxu0
    %v96 = vadd.f32 %v72, %v95
    %97 = vdwg.mxu0
    %v98 = vmul.f32 %v96, 0.5
    %v99 = vmul.f32 %v98, 1.442695
    %v100 = vpow.pop %v99
    %102 = vrot.lane.b32.xlu0 %v96, 16
    %v103 = vpop.permute.xlu0 %102
    %105 = vrot.lane.b32.xlu0 %v96, 32
    %v106 = vpop.permute.xlu0 %105
    %108 = vrot.lane.b32.xlu0 %v96, 48
    %v109 = vpop.permute.xlu0 %108
    %vm111 = vcmask 130048
    %v112 = vsel %vm111, %v96, %v103
    %v113 = vsel %vm74, %v112, %v106
    %vm114 = vcmask 392192
    %v115 = vsel %vm114, %v113, %v109
    %117 = vrot.lane.b32.xlu0 %v100, 112
    %v118 = vpop.permute.xlu0 %117
    %120 = vrot.lane.b32.xlu0 %v100, 16
    %v121 = vpop.permute.xlu0 %120
    %123 = vrot.lane.b32.xlu0 %v100, 32
    %v124 = vpop.permute.xlu0 %123
    %v126 = vsel %vm111, %v118, %v100
    %v127 = vsel %vm74, %v126, %v121
    %v128 = vsel %vm114, %v127, %v124
    %v129 = vld [vmem:[#allocation7] sm:$0xff]
    %v130 = vmul.f32 %v128, %v129
    %v131 = vadd.f32 %v115, %v130
    %vm132 = vcmask 523264
    %133 = vst.msk [vmem:[#allocation8] sm:$0xff] %vm132, %v131
    %134 = vst.msk [vmem:[#allocation9] sm:$0xff] %vm111, %v96
    %135 = vrot.lane.b32.xlu0 %v96, 112
    %v136 = vpop.permute.xlu0 %135
    %138 = vst.msk [vmem:[#allocation11] sm:$0xff] %vm111, %v136
    // Predicated region
    $region30: #{tpu_custom_call.1} parent=1 // pred_check
      _
    $region31: #{tpu_custom_call.1} parent=1 // pred_check_branch
      %140 = sbr.rel (0) target = $region33
    $region32: #{tpu_custom_call.1} parent=1 // pred_region
      %142 = vsyncadd [#allocation4], 0
      %s144 = sshll.u32 [#allocation8], 4
      %s145 = int_to_ptr.vmem [resolvable:$true] %s144
      %s146 = sshll.u32 %s4, 4
      %s147 = int_to_ptr.hbm [resolvable:$true] %s146
      %149 = dma.vmem_to_hbm [thread:$0]  %s145, 128, %s147, [#allocation4]
    $region33: #{tpu_custom_call.1} parent=1 // pred_fallthru
      _
    // Predicated region
    $region34: #{tpu_custom_call.1} parent=1 // pred_check
      _
    $region35: #{tpu_custom_call.1} parent=1 // pred_check_branch
      %151 = sbr.rel (0) target = $region37
    $region36: #{tpu_custom_call.1} parent=1 // pred_region
      %153 = vsyncadd [#allocation10], 0
      %s155 = sshll.u32 [#allocation9], 4
      %s156 = int_to_ptr.vmem [resolvable:$true] %s155
      %s157 = sshll.u32 %s5, 4
      %s158 = int_to_ptr.hbm [resolvable:$true] %s157
      %160 = dma.vmem_to_hbm [thread:$0]  %s156, 128, %s158, [#allocation10]
    $region37: #{tpu_custom_call.1} parent=1 // pred_fallthru
      _
    // Predicated region
    $region38: #{tpu_custom_call.1} parent=1 // pred_check
      _
    $region39: #{tpu_custom_call.1} parent=1 // pred_check_branch
      %162 = sbr.rel (0) target = $region41
    $region40: #{tpu_custom_call.1} parent=1 // pred_region
      %164 = vsyncadd [#allocation10], 0
      %s166 = sshll.u32 [#allocation11], 4
      %s167 = int_to_ptr.vmem [resolvable:$true] %s166
      %s168 = sshll.u32 %s6, 4
      %s169 = int_to_ptr.hbm [resolvable:$true] %s168
      %171 = dma.vmem_to_hbm [thread:$0]  %s167, 128, %s169, [#allocation10]
    $region41: #{tpu_custom_call.1} parent=1 // pred_fallthru
      _
    // Predicated region
    $region42: #{tpu_custom_call.1} parent=1 // pred_check
      _
    $region43: #{tpu_custom_call.1} parent=1 // pred_check_branch
      %173 = sbr.rel (0) target = $region45
    $region44: #{tpu_custom_call.1} parent=1 // pred_region
      %175 = dma.done [#allocation4], 128
    $region45: #{tpu_custom_call.1} parent=1 // pred_fallthru
      _
    // Predicated region
    $region46: #{tpu_custom_call.1} parent=1 // pred_check
      _
    $region47: #{tpu_custom_call.1} parent=1 // pred_check_branch
      %177 = sbr.rel (0) target = $region49
    $region48: #{tpu_custom_call.1} parent=1 // pred_region
      %179 = dma.done [#allocation10], 128
    $region49: #{tpu_custom_call.1} parent=1 // pred_fallthru
      _
    // Predicated region
    $region50: #{tpu_custom_call.1} parent=1 // pred_check
      _
    $region51: #{tpu_custom_call.1} parent=1 // pred_check_branch
      %181 = sbr.rel (0) target = $region53
    $region52: #{tpu_custom_call.1} parent=1 // pred_region
      %183 = dma.done [#allocation10], 128
    $region53: #{tpu_custom_call.1} parent=1 // pred_fallthru
      _
    %184 = vsyncpa [#allocation3], 1
    %185 = vsyncpa [#allocation6], 1
    %186 = vsyncpa [#allocation4], 1
    %187 = vsyncpa [#allocation10], 1

</llo_original>
